<compile_context>
chip_gen: v5e
topology: v5e:2x2
jax: 0.10.0
libtpu: 0.0.40
codegen_flags: <defaults>
</compile_context>

<pallas_src>
import functools

import jax
import jax.numpy as jnp
from jax.experimental import pallas as pl
from jax.experimental.pallas import tpu as pltpu

EPS = 1e-5  # nn.BatchNorm1d default

# ~1 MiB of f32 per input tile. With BlockSpec double-buffering of the input and
# output tiles plus in-kernel f32 temporaries this keeps the per-step footprint
# comfortably inside every generation's default scoped VMEM budget.
_TILE_BYTES = 1 << 20


def _round_up(v, m):
    return ((v + m - 1) // m) * m


def _pick_row_tile(M, C):
    """Rows per tile for the (M, C) layout: multiple of 8 sublanes, VMEM-bounded."""
    rows = max(8, (_TILE_BYTES // (C * 4)) // 8 * 8)
    rows = min(rows, _round_up(M, 8))
    return max(8, rows)


def _pick_lane_tile(L, C):
    """Lane-tile for the (N, C, L) layout: multiple of 128 lanes (or full L)."""
    if L <= 128:
        return L
    tl = max(128, (_TILE_BYTES // (C * 4)) // 128 * 128)
    return min(tl, _round_up(L, 128))


# ----------------------------- Pallas kernels --------------------------------

def _stats2d_kernel(x_ref, sums_ref, *, m_total, need_mask):
    """Accumulate per-channel sum / sum-of-squares over (tm, C) row tiles."""
    i = pl.program_id(0)

    @pl.when(i == 0)
    def _():
        sums_ref[...] = jnp.zeros_like(sums_ref)

    x = x_ref[...].astype(jnp.float32)                         # (tm, C)
    if need_mask:  # static: only the ragged last tile needs masking
        row = jax.lax.broadcasted_iota(jnp.int32, x.shape, 0) + i * x.shape[0]
        x = jnp.where(row < m_total, x, 0.0)
    sums_ref[0:1] += jnp.sum(x, axis=0, keepdims=True)         # sum
    sums_ref[1:2] += jnp.sum(x * x, axis=0, keepdims=True)     # sum of squares


def _stats3d_kernel(x_ref, sums_ref, *, l_total, need_mask):
    """Accumulate per-channel sum / sum-of-squares over (1, C, tl) tiles (native NCL)."""
    n = pl.program_id(0)
    li = pl.program_id(1)

    @pl.when((n == 0) & (li == 0))
    def _():
        sums_ref[...] = jnp.zeros_like(sums_ref)

    x = x_ref[...].astype(jnp.float32)                         # (1, C, tl)
    if need_mask:
        lane = jax.lax.broadcasted_iota(jnp.int32, x.shape, 2) + li * x.shape[2]
        x = jnp.where(lane < l_total, x, 0.0)
    sums_ref[0:1] += jnp.sum(x, axis=2, keepdims=True)         # (1, C, 1)
    sums_ref[1:2] += jnp.sum(x * x, axis=2, keepdims=True)


def _apply_kernel(x_ref, scale_ref, shift_ref, o_ref):
    """out = x * scale + shift with per-channel scale/shift (works for 2D and 3D tiles)."""
    x = x_ref[...].astype(jnp.float32)
    o_ref[...] = (x * scale_ref[...] + shift_ref[...]).astype(o_ref.dtype)


# ----------------------------- layout-specific wrappers -----------------------

def _batchnorm_2d(x, gamma, beta, eps):
    M, C = x.shape
    tm = _pick_row_tile(M, C)
    n_tiles = pl.cdiv(M, tm)

    # Pass 1: per-channel sum and sum-of-squares (reduction axis -> "arbitrary").
    sums = pl.pallas_call(
        functools.partial(_stats2d_kernel, m_total=M, need_mask=(M % tm != 0)),
        out_shape=jax.ShapeDtypeStruct((2, C), jnp.float32),
        grid=(n_tiles,),
        in_specs=[pl.BlockSpec((tm, C), lambda i: (i, 0))],
        out_specs=pl.BlockSpec((2, C), lambda i: (0, 0)),
        compiler_params=pltpu.CompilerParams(dimension_semantics=("arbitrary",)),
    )(x)

    # O(C) math to fold mean/var/gamma/beta into one scale + shift per channel.
    # NOTE: sum/sumsq variance can cancel if |mean| >> std; accumulation is f32.
    inv_m = 1.0 / M
    mean = sums[0:1] * inv_m                                   # (1, C)
    var = jnp.maximum(sums[1:2] * inv_m - mean * mean, 0.0)    # biased variance
    inv_std = jax.lax.rsqrt(var + eps)
    scale = gamma.reshape(1, C).astype(jnp.float32) * inv_std
    shift = beta.reshape(1, C).astype(jnp.float32) - mean * scale

    # Pass 2: normalize (fully parallel -> megacore-shardable on v7x).
    return pl.pallas_call(
        _apply_kernel,
        out_shape=jax.ShapeDtypeStruct((M, C), x.dtype),
        grid=(n_tiles,),
        in_specs=[
            pl.BlockSpec((tm, C), lambda i: (i, 0)),
            pl.BlockSpec((1, C), lambda i: (0, 0)),
            pl.BlockSpec((1, C), lambda i: (0, 0)),
        ],
        out_specs=pl.BlockSpec((tm, C), lambda i: (i, 0)),
        compiler_params=pltpu.CompilerParams(dimension_semantics=("parallel",)),
    )(x, scale, shift)


def _batchnorm_3d(x, gamma, beta, eps):
    # Native (N, C, L) layout: C on sublanes, L on lanes -> no HBM transposes.
    N, C, L = x.shape
    tl = _pick_lane_tile(L, C)
    n_l = pl.cdiv(L, tl)

    sums = pl.pallas_call(
        functools.partial(_stats3d_kernel, l_total=L, need_mask=(L % tl != 0)),
        out_shape=jax.ShapeDtypeStruct((2, C, 1), jnp.float32),
        grid=(N, n_l),
        in_specs=[pl.BlockSpec((1, C, tl), lambda n, l: (n, 0, l))],
        out_specs=pl.BlockSpec((2, C, 1), lambda n, l: (0, 0, 0)),
        compiler_params=pltpu.CompilerParams(
            dimension_semantics=("arbitrary", "arbitrary")),
    )(x)

    inv_cnt = 1.0 / (N * L)
    mean = sums[0:1] * inv_cnt                                 # (1, C, 1)
    var = jnp.maximum(sums[1:2] * inv_cnt - mean * mean, 0.0)
    inv_std = jax.lax.rsqrt(var + eps)
    scale = gamma.reshape(1, C, 1).astype(jnp.float32) * inv_std
    shift = beta.reshape(1, C, 1).astype(jnp.float32) - mean * scale

    return pl.pallas_call(
        _apply_kernel,
        out_shape=jax.ShapeDtypeStruct((N, C, L), x.dtype),
        grid=(N, n_l),
        in_specs=[
            pl.BlockSpec((1, C, tl), lambda n, l: (n, 0, l)),
            pl.BlockSpec((1, C, 1), lambda n, l: (0, 0, 0)),
            pl.BlockSpec((1, C, 1), lambda n, l: (0, 0, 0)),
        ],
        out_specs=pl.BlockSpec((1, C, tl), lambda n, l: (n, 0, l)),
        compiler_params=pltpu.CompilerParams(
            dimension_semantics=("parallel", "parallel")),
    )(x, scale, shift)


# ----------------------------- module wrapper ---------------------------------

def my_batchnorm1d(x, gamma, beta, eps=EPS):
    """Forward of MyBatchNorm1d.

    x: (N, C) or (N, C, L), any float dtype (upcast to f32 happens inside the kernel)
    gamma, beta: (C,) affine parameters of nn.BatchNorm1d
    """
    # `if x.size(0) > 1` in the PyTorch module -> static Python branch here.
    if x.shape[0] <= 1:
        return x

    # TODO(synk): running_mean/running_var buffer updates (training-time module
    # state mutation) are not modeled; they do not affect the forward output.

    if x.ndim == 2:
        return _batchnorm_2d(x, gamma, beta, eps)
    elif x.ndim == 3:
        return _batchnorm_3d(x, gamma, beta, eps)
    else:
        raise ValueError("BatchNorm1d expects (N, C) or (N, C, L) input")


# ----------------------------- reference --------------------------------------

def ref_batchnorm1d(x, gamma, beta, eps=EPS):
    if x.shape[0] <= 1:
        return x
    axes = (0,) if x.ndim == 2 else (0, 2)
    mean = jnp.mean(x, axis=axes, keepdims=True)
    var = jnp.mean((x - mean) ** 2, axis=axes, keepdims=True)  # biased
    shape = (1, -1) + (1,) * (x.ndim - 2)
    g = gamma.reshape(shape)
    b = beta.reshape(shape)
    return (x - mean) / jnp.sqrt(var + eps) * g + b


# ----------------------------- main --------------------------------------------

if __name__ == "__main__":
    key = jax.random.PRNGKey(0)
    k1, k2, k3, k4, k5, k6 = jax.random.split(key, 6)

    C = 128  # channels on the 128-lane axis (2D path) -> lane-dense stores

    # affine parameters (PyTorch init is ones/zeros; random to exercise the path)
    gamma = 1.0 + 0.1 * jax.random.normal(k1, (C,), jnp.float32)
    beta = 0.1 * jax.random.normal(k2, (C,), jnp.float32)

    fwd = jax.jit(my_batchnorm1d)

    # case 1: (N, C) with N > 1 -> BatchNorm path
    x2d = jax.random.normal(k3, (8, C), jnp.float32) * 2.0 + 0.5
    out2d = fwd(x2d, gamma, beta)
    jax.block_until_ready(out2d)
    ref2d = ref_batchnorm1d(x2d, gamma, beta)
    assert out2d.shape == x2d.shape and out2d.dtype == x2d.dtype
    assert bool(jnp.all(jnp.isfinite(out2d)))
    assert bool(jnp.allclose(out2d, ref2d, atol=1e-4, rtol=1e-4))

    # case 2: (N, C, L) with N > 1 -> stats over batch + spatial, native layout
    x3d = jax.random.normal(k4, (4, C, 16), jnp.float32) * 3.0 - 1.0
    out3d = fwd(x3d, gamma, beta)
    jax.block_until_ready(out3d)
    ref3d = ref_batchnorm1d(x3d, gamma, beta)
    assert out3d.shape == x3d.shape
    assert bool(jnp.allclose(out3d, ref3d, atol=1e-4, rtol=1e-4))

    # case 3: bf16 input -> upcast happens inside the kernel, bf16 output
    xbf = (jax.random.normal(k5, (16, C), jnp.float32) * 1.5 + 0.3).astype(jnp.bfloat16)
    outbf = fwd(xbf, gamma, beta)
    jax.block_until_ready(outbf)
    refbf = ref_batchnorm1d(xbf.astype(jnp.float32), gamma, beta)
    assert outbf.dtype == jnp.bfloat16
    assert bool(jnp.allclose(outbf.astype(jnp.float32), refbf, atol=5e-2, rtol=5e-2))

    # case 4: batch size 1 -> identity (the module's early-return branch)
    x1 = jax.random.normal(k6, (1, C), jnp.float32)
    out1 = fwd(x1, gamma, beta)
    jax.block_until_ready(out1)
    assert bool(jnp.array_equal(out1, x1))

    print("KERNEL_OK")
</pallas_src>

<mosaic_0001>
module attributes {stable_mosaic.version = 11 : i64} {
  func.func @_apply_kernel(%arg0: i32, %arg1: memref<8x128xf32, #tpu.memory_space<vmem>>, %arg2: memref<1x128xf32, #tpu.memory_space<vmem>>, %arg3: memref<1x128xf32, #tpu.memory_space<vmem>>, %arg4: memref<8x128xf32, #tpu.memory_space<vmem>>) attributes {dimension_semantics = [#tpu.dimension_semantics<parallel>], iteration_bounds = array<i64: 1>, scalar_prefetch = 0 : i64, scratch_operands = 0 : i64, tpu.core_type = #tpu.core_type<tc>, window_params = [{transform_indices = @transform_0, window_bounds = array<i64: 8, 128>}, {pipeline_mode = #tpu.pipeline_mode<synchronous>, transform_indices = @transform_1, window_bounds = array<i64: 1, 128>}, {pipeline_mode = #tpu.pipeline_mode<synchronous>, transform_indices = @transform_2, window_bounds = array<i64: 1, 128>}, {transform_indices = @transform_3, window_bounds = array<i64: 8, 128>}]} {
    %c0 = arith.constant 0 : index
    %c0_0 = arith.constant 0 : index
    %0 = vector.load %arg1[%c0, %c0_0] : memref<8x128xf32, #tpu.memory_space<vmem>>, vector<8x128xf32>
    %c0_1 = arith.constant 0 : index
    %c0_2 = arith.constant 0 : index
    %1 = vector.load %arg2[%c0_1, %c0_2] : memref<1x128xf32, #tpu.memory_space<vmem>>, vector<1x128xf32>
    %2 = vector.broadcast %1 : vector<1x128xf32> to vector<8x128xf32>
    %3 = arith.mulf %0, %2 : vector<8x128xf32>
    %c0_3 = arith.constant 0 : index
    %c0_4 = arith.constant 0 : index
    %4 = vector.load %arg3[%c0_3, %c0_4] : memref<1x128xf32, #tpu.memory_space<vmem>>, vector<1x128xf32>
    %5 = vector.broadcast %4 : vector<1x128xf32> to vector<8x128xf32>
    %6 = arith.addf %3, %5 : vector<8x128xf32>
    %c0_5 = arith.constant 0 : index
    %c0_6 = arith.constant 0 : index
    %7 = vector.load %arg4[%c0_5, %c0_6] : memref<8x128xf32, #tpu.memory_space<vmem>>, vector<8x128xf32>
    tpu.vector_store %arg4[%c0_5, %c0_6], %6 {strides = array<i32>} : memref<8x128xf32, #tpu.memory_space<vmem>>, vector<8x128xf32>,
    return
  }
  func.func @transform_0(%arg0: i32) -> (i32, i32) {
    %c0_i32 = arith.constant 0 : i32
    %c0_i32_0 = arith.constant 0 : i32
    return %arg0, %c0_i32 : i32, i32
  }
  func.func @transform_1(%arg0: i32) -> (i32, i32) {
    %c0_i32 = arith.constant 0 : i32
    %c0_i32_0 = arith.constant 0 : i32
    %c0_i32_1 = arith.constant 0 : i32
    return %c0_i32, %c0_i32_0 : i32, i32
  }
  func.func @transform_2(%arg0: i32) -> (i32, i32) {
    %c0_i32 = arith.constant 0 : i32
    %c0_i32_0 = arith.constant 0 : i32
    %c0_i32_1 = arith.constant 0 : i32
    return %c0_i32, %c0_i32_0 : i32, i32
  }
  func.func @transform_3(%arg0: i32) -> (i32, i32) {
    %c0_i32 = arith.constant 0 : i32
    %c0_i32_0 = arith.constant 0 : i32
    return %arg0, %c0_i32 : i32, i32
  }
}

module attributes {stable_mosaic.version = 11 : i64} {
  func.func @_stats2d_kernel(%arg0: i32, %arg1: memref<8x128xf32, #tpu.memory_space<vmem>>, %arg2: memref<2x128xf32, #tpu.memory_space<vmem>>) attributes {dimension_semantics = [#tpu.dimension_semantics<arbitrary>], iteration_bounds = array<i64: 1>, scalar_prefetch = 0 : i64, scratch_operands = 0 : i64, tpu.core_type = #tpu.core_type<tc>, window_params = [{transform_indices = @transform_0, window_bounds = array<i64: 8, 128>}, {pipeline_mode = #tpu.pipeline_mode<synchronous>, transform_indices = @transform_1, window_bounds = array<i64: 2, 128>}]} {
    %c0_i32 = arith.constant 0 : i32
    %0 = arith.cmpi eq, %arg0, %c0_i32 : i32
    %1 = arith.extui %0 : i1 to i32
    %c0_i32_0 = arith.constant 0 : i32
    %2 = arith.cmpi ne, %1, %c0_i32_0 : i32
    scf.if %2 {
      %cst_10 = arith.constant 0.000000e+00 : f32
      %15 = vector.broadcast %cst_10 : f32 to vector<2x128xf32>
      %c0_11 = arith.constant 0 : index
      %c0_12 = arith.constant 0 : index
      %16 = vector.load %arg2[%c0_11, %c0_12] : memref<2x128xf32, #tpu.memory_space<vmem>>, vector<2x128xf32>
      tpu.vector_store %arg2[%c0_11, %c0_12], %15 {strides = array<i32>} : memref<2x128xf32, #tpu.memory_space<vmem>>, vector<2x128xf32>,
    } else {
    }
    %c0 = arith.constant 0 : index
    %c0_1 = arith.constant 0 : index
    %3 = vector.load %arg1[%c0, %c0_1] : memref<8x128xf32, #tpu.memory_space<vmem>>, vector<8x128xf32>
    %c0_2 = arith.constant 0 : index
    %c0_3 = arith.constant 0 : index
    %4 = vector.load %arg2[%c0_2, %c0_3] : memref<2x128xf32, #tpu.memory_space<vmem>>, vector<1x128xf32>
    %cst = arith.constant dense<0.000000e+00> : vector<128xf32>
    %5 = vector.multi_reduction <add>, %3, %cst [0] : vector<8x128xf32> to vector<128xf32>
    %6 = vector.shape_cast %5 : vector<128xf32> to vector<1x128xf32>
    %7 = arith.addf %4, %6 : vector<1x128xf32>
    %c0_4 = arith.constant 0 : index
    %c0_5 = arith.constant 0 : index
    %8 = vector.load %arg2[%c0_4, %c0_5] : memref<2x128xf32, #tpu.memory_space<vmem>>, vector<1x128xf32>
    tpu.vector_store %arg2[%c0_4, %c0_5], %7 {strides = array<i32>} : memref<2x128xf32, #tpu.memory_space<vmem>>, vector<1x128xf32>,
    %c1 = arith.constant 1 : index
    %c0_6 = arith.constant 0 : index
    %9 = vector.load %arg2[%c1, %c0_6] : memref<2x128xf32, #tpu.memory_space<vmem>>, vector<1x128xf32>
    %10 = arith.mulf %3, %3 : vector<8x128xf32>
    %cst_7 = arith.constant dense<0.000000e+00> : vector<128xf32>
    %11 = vector.multi_reduction <add>, %10, %cst_7 [0] : vector<8x128xf32> to vector<128xf32>
    %12 = vector.shape_cast %11 : vector<128xf32> to vector<1x128xf32>
    %13 = arith.addf %9, %12 : vector<1x128xf32>
    %c1_8 = arith.constant 1 : index
    %c0_9 = arith.constant 0 : index
    %14 = vector.load %arg2[%c1_8, %c0_9] : memref<2x128xf32, #tpu.memory_space<vmem>>, vector<1x128xf32>
    tpu.vector_store %arg2[%c1_8, %c0_9], %13 {strides = array<i32>} : memref<2x128xf32, #tpu.memory_space<vmem>>, vector<1x128xf32>,
    return
  }
  func.func @transform_0(%arg0: i32) -> (i32, i32) {
    %c0_i32 = arith.constant 0 : i32
    %c0_i32_0 = arith.constant 0 : i32
    return %arg0, %c0_i32 : i32, i32
  }
  func.func @transform_1(%arg0: i32) -> (i32, i32) {
    %c0_i32 = arith.constant 0 : i32
    %c0_i32_0 = arith.constant 0 : i32
    %c0_i32_1 = arith.constant 0 : i32
    return %c0_i32, %c0_i32_0 : i32, i32
  }
}

</mosaic_0001>

<llo_original>
// kernel: my_batchnorm1d.2
$region0: #{my_batchnorm1d.2}
  #allocation0 [shape = 'u32[]', space=smem, size = 0x4, offset = 0x4, fixed_abs, tag = 'smem constant byte address 0x4 - core index']
  #allocation1 [shape = 'u32[72,128]{1,0:T(1,128)}', space=vmem, size = 0x9000, scoped, tag = 'internal scratch']
  %s0 = inlined_call_operand.hbm [shape: f32[8,128], index: 0, kind: input, shape index: {}]
  %s1 = inlined_call_operand.vmem [shape: f32[2,128], index: 1, kind: output, shape index: {}]
  %s2 = sld [smem:[#allocation0]]
  $region22: #{my_batchnorm1d.2} parent=0
    _
  %s4 = ssub.s32 1, %s2
  %s5 = scalar_select 0, %s4, %s2
  $region1: #{my_batchnorm1d.2} parent=0
    #allocation2 [shape = 'u8[4096]{0}', space=vmem, size = 0x1000, scoped, tag = 'input window, operand 0, single buffered']
    #allocation3 [shape = 's32[1]{0}', space=sflag, size = 0x4, scoped, tag = 'scoped memory for my_batchnorm1d.2']
    %6 = vsyncpa [#allocation3], 0
    // Predicated region
    $region2: #{my_batchnorm1d.2} parent=1 // pred_check
      _
    $region3: #{my_batchnorm1d.2} parent=1 // pred_check_branch
      %8 = sbr.rel (0) target = $region5
    $region4: #{my_batchnorm1d.2} parent=1 // pred_region
      %10 = vsyncadd [#allocation3], 0
      %s12 = sshll.u32 %s0, 4
      %s13 = int_to_ptr.hbm [resolvable:$true] %s12
      %s14 = sshll.u32 [#allocation2], 4
      %s15 = int_to_ptr.vmem [resolvable:$true] %s14
      %17 = dma.hbm_to_vmem [thread:$0]  %s13, 128, %s15, [#allocation3]
    $region5: #{my_batchnorm1d.2} parent=1 // pred_fallthru
      _
    // Predicated region
    $region6: #{my_batchnorm1d.2} parent=1 // pred_check
      _
    $region7: #{my_batchnorm1d.2} parent=1 // pred_check_branch
      %19 = sbr.rel (0) target = $region9
    $region8: #{my_batchnorm1d.2} parent=1 // pred_region
      %21 = dma.done [#allocation3], 128
    $region9: #{my_batchnorm1d.2} parent=1 // pred_fallthru
      _
    %p22 = scmp.eq.s32.totalorder 0, 0
    // Predicated region
    $region10: #{my_batchnorm1d.2} parent=1 // pred_check
      %p23 = pneg %p22
    $region11: #{my_batchnorm1d.2} parent=1 // pred_check_branch
      %25 = sbr.rel (%p23) target = $region13
    $region12: #{my_batchnorm1d.2} parent=1 // pred_region
      %26 = vst [vmem:[%s1] sm:$0x3] 0.0
    $region13: #{my_batchnorm1d.2} parent=1 // pred_fallthru
      _
    %v27 = vld [vmem:[#allocation2] sm:$0xff]
    %v28 = vld [vmem:[%s1] sm:$0x1]
    %v29 = vrot.slane %v27, 4
    %v30 = vadd.f32 %v27, %v29
    %v31 = vrot.slane %v30, 2
    %v32 = vadd.f32 %v30, %v31
    %v33 = vrot.slane %v32, 1
    %v34 = vadd.f32 %v32, %v33
    %v35 = vadd.f32 %v28, %v34
    %36 = vst [vmem:[%s1] sm:$0x1] %v35
    %v37 = vld [vmem:[%s1 + $0x1] sm:$0x1]
    %v38 = vmul.f32 %v27, %v27
    %v39 = vrot.slane %v38, 4
    %v40 = vadd.f32 %v38, %v39
    %v41 = vrot.slane %v40, 2
    %v42 = vadd.f32 %v40, %v41
    %v43 = vrot.slane %v42, 1
    %v44 = vadd.f32 %v42, %v43
    %v45 = vadd.f32 %v37, %v44
    %46 = vst [vmem:[%s1 + $0x1] sm:$0x1] %v45
    // Predicated region
    $region14: #{my_batchnorm1d.2} parent=1 // pred_check
      _
    $region15: #{my_batchnorm1d.2} parent=1 // pred_check_branch
      %48 = sbr.rel (0) target = $region17
    $region16: #{my_batchnorm1d.2} parent=1 // pred_region
      _
    $region17: #{my_batchnorm1d.2} parent=1 // pred_fallthru
      _
    // Predicated region
    $region18: #{my_batchnorm1d.2} parent=1 // pred_check
      _
    $region19: #{my_batchnorm1d.2} parent=1 // pred_check_branch
      %50 = sbr.rel (0) target = $region21
    $region20: #{my_batchnorm1d.2} parent=1 // pred_region
      _
    $region21: #{my_batchnorm1d.2} parent=1 // pred_fallthru
      _
    %51 = vsyncpa [#allocation3], 1

// kernel: my_batchnorm1d.3
$region0: #{my_batchnorm1d.3}
  #allocation0 [shape = 'u32[]', space=smem, size = 0x4, offset = 0x4, fixed_abs, tag = 'smem constant byte address 0x4 - core index']
  #allocation1 [shape = 'u32[72,128]{1,0:T(1,128)}', space=vmem, size = 0x9000, scoped, tag = 'internal scratch']
  %s0 = inlined_call_operand.vmem [shape: f32[8,128], index: 0, kind: input, shape index: {}]
  %s1 = inlined_call_operand.vmem [shape: f32[1,128], index: 1, kind: input, shape index: {}]
  %s2 = inlined_call_operand.vmem [shape: f32[1,128], index: 2, kind: input, shape index: {}]
  %s3 = inlined_call_operand.hbm [shape: f32[8,128], index: 3, kind: output, shape index: {}]
  %s4 = sld [smem:[#allocation0]]
  $region22: #{my_batchnorm1d.3} parent=0
    _
  %s6 = ssub.s32 1, %s4
  %s7 = scalar_select 0, %s6, %s4
  $region1: #{my_batchnorm1d.3} parent=0
    #allocation2 [shape = 'u8[4096]{0}', space=vmem, size = 0x1000, scoped, tag = 'output window, operand 0, single buffered']
    #allocation3 [shape = 's32[1]{0}', space=sflag, size = 0x4, scoped, tag = 'scoped memory for my_batchnorm1d.3']
    %8 = vsyncpa [#allocation3], 0
    // Predicated region
    $region2: #{my_batchnorm1d.3} parent=1 // pred_check
      _
    $region3: #{my_batchnorm1d.3} parent=1 // pred_check_branch
      %10 = sbr.rel (0) target = $region5
    $region4: #{my_batchnorm1d.3} parent=1 // pred_region
      _
    $region5: #{my_batchnorm1d.3} parent=1 // pred_fallthru
      _
    // Predicated region
    $region6: #{my_batchnorm1d.3} parent=1 // pred_check
      _
    $region7: #{my_batchnorm1d.3} parent=1 // pred_check_branch
      %12 = sbr.rel (0) target = $region9
    $region8: #{my_batchnorm1d.3} parent=1 // pred_region
      _
    $region9: #{my_batchnorm1d.3} parent=1 // pred_fallthru
      _
    // Predicated region
    $region10: #{my_batchnorm1d.3} parent=1 // pred_check
      _
    $region11: #{my_batchnorm1d.3} parent=1 // pred_check_branch
      %14 = sbr.rel (0) target = $region13
    $region12: #{my_batchnorm1d.3} parent=1 // pred_region
      _
    $region13: #{my_batchnorm1d.3} parent=1 // pred_fallthru
      _
    %v15 = vld [vmem:[%s0] sm:$0xff]
    %v16 = vld [vmem:[%s1] sm:$0x1]
    %v18 = vperm.slane %v16, 0
    %v20 = vmul.f32 %v15, %v18
    %v21 = vld [vmem:[%s2] sm:$0x1]
    %v23 = vperm.slane %v21, 0
    %v25 = vadd.f32 %v20, %v23
    %26 = vst [vmem:[#allocation2] sm:$0xff] %v25
    // Predicated region
    $region14: #{my_batchnorm1d.3} parent=1 // pred_check
      _
    $region15: #{my_batchnorm1d.3} parent=1 // pred_check_branch
      %28 = sbr.rel (0) target = $region17
    $region16: #{my_batchnorm1d.3} parent=1 // pred_region
      %30 = vsyncadd [#allocation3], 0
      %s32 = sshll.u32 [#allocation2], 4
      %s33 = int_to_ptr.vmem [resolvable:$true] %s32
      %s34 = sshll.u32 %s3, 4
      %s35 = int_to_ptr.hbm [resolvable:$true] %s34
      %37 = dma.vmem_to_hbm [thread:$0]  %s33, 128, %s35, [#allocation3]
    $region17: #{my_batchnorm1d.3} parent=1 // pred_fallthru
      _
    // Predicated region
    $region18: #{my_batchnorm1d.3} parent=1 // pred_check
      _
    $region19: #{my_batchnorm1d.3} parent=1 // pred_check_branch
      %39 = sbr.rel (0) target = $region21
    $region20: #{my_batchnorm1d.3} parent=1 // pred_region
      %41 = dma.done [#allocation3], 128
    $region21: #{my_batchnorm1d.3} parent=1 // pred_fallthru
      _
    %42 = vsyncpa [#allocation3], 1

</llo_original>
